<compile_context>
chip_gen: v7x
topology: tpu7x:2x2x1
jax: 0.10.0
libtpu: 0.0.40
codegen_flags: <defaults>
</compile_context>

<pallas_src>
import jax
import jax.numpy as jnp
from jax.experimental import pallas as pl
from jax.experimental.pallas import tpu as pltpu


def _make_pointnet_kernel(n_mlp, n_fc, mlp_dolastrelu, fc_dolastrelu,
                          tb, compute_dtype, matmul_dtype):
    """Builds a kernel closed over static layer counts / relu flags / tile sizes."""

    def kernel(x_ref, *rest):
        n_params = 2 * (n_mlp + n_fc)
        params = rest[:n_params]
        o_ref = rest[n_params]
        pool_ref = rest[n_params + 1]          # (tb, C_mlp) f32 running max

        k = pl.program_id(1)

        @pl.when(k == 0)
        def _init():
            pool_ref[...] = jnp.full(pool_ref.shape, -jnp.inf, dtype=pool_ref.dtype)

        # ---- Pointwise MLP in (batch, channel, points) orientation.
        # x_ref: (tb, C_in, TN) bf16; channels on sublanes, points on lanes.
        h = x_ref[...]
        for i in range(n_mlp):
            w = params[2 * i][...]                          # (C_out, C_in), bf16
            wb = jnp.broadcast_to(w, (tb,) + w.shape)       # batched-matmul lhs
            acc = jnp.einsum('boc,bcn->bon', wb, h.astype(matmul_dtype),
                             preferred_element_type=jnp.float32)
            if i < n_mlp - 1:
                b = params[2 * i + 1][...]                  # (1, C_out, 1)
                h = jnp.maximum(acc.astype(compute_dtype) + b, 0)
            else:
                # Last layer: bias/ReLU deferred past the max-pool; feed the
                # raw x @ W product into the running per-channel max.
                pool_ref[...] = jnp.maximum(pool_ref[...], jnp.max(acc, axis=-1))

        # ---- Finalize: deferred bias/ReLU, FC stack, lane-dense store.
        @pl.when(k == pl.num_programs(1) - 1)
        def _finalize():
            g = pool_ref[...] + params[2 * (n_mlp - 1) + 1][...]   # (tb, C_mlp) f32
            if mlp_dolastrelu:
                g = jnp.maximum(g, 0.0)
            g = g.astype(compute_dtype)
            for j in range(n_fc):
                w = params[2 * n_mlp + 2 * j][...]          # (C_in, C_out[_pad]) bf16
                b = params[2 * n_mlp + 2 * j + 1][...]      # (1, C_out[_pad])
                acc = jnp.dot(g.astype(matmul_dtype), w,
                              preferred_element_type=jnp.float32)
                g = acc.astype(compute_dtype) + b
                if (j < n_fc - 1) or fc_dolastrelu:
                    g = jnp.maximum(g, 0)
            o_ref[...] = g.astype(o_ref.dtype)

    return kernel


def _device_plan():
    """Generation-aware VMEM budget / elementwise dtype / megacore hint."""
    kind = ""
    try:
        kind = jax.devices()[0].device_kind.lower()
    except Exception:
        pass
    if "v7" in kind:
        # 64 MiB VMEM per TensorCore, 2 TCs/chip -> keep >= 2 batch-grid steps.
        return dict(vmem_limit=44 * 1024 * 1024, act_budget=12 * 1024 * 1024,
                    min_batch_steps=2, compute_dtype=jnp.bfloat16)
    if "v5" in kind and "v5p" not in kind:
        # v5e: 128 MiB physical VMEM but no bf16 VPU -> keep elementwise in f32.
        return dict(vmem_limit=64 * 1024 * 1024, act_budget=20 * 1024 * 1024,
                    min_batch_steps=1, compute_dtype=jnp.float32)
    # v6e / other 128-MiB parts / unknown.
    return dict(vmem_limit=64 * 1024 * 1024, act_budget=24 * 1024 * 1024,
                min_batch_steps=1, compute_dtype=jnp.bfloat16)


def _choose_tiles(B, N, c_in, mlp_out_dims, act_budget, min_batch_steps,
                  compute_dtype, tile_batch=None, tile_points=None):
    """Pick (tb, b_pad, tn, n_pad): batch tile / padded batch / points tile / padded points."""
    cdt_bytes = jnp.dtype(compute_dtype).itemsize

    # Points tile: lane-aligned (multiple of 128) and capped so the per-step
    # footprint is independent of N. N is padded up to a multiple of tn.
    n128 = pl.cdiv(N, 128) * 128
    tn = tile_points if tile_points is not None else min(n128, 2048)
    tn = max(128, (int(tn) // 128) * 128)
    n_pad = pl.cdiv(N, tn) * tn

    # Per-batch-element, per-step bytes: double-buffered bf16 input block,
    # compute-dtype activations, f32 accumulator of the widest layer, and the
    # per-layer broadcast weight replicas.
    per_b = 2 * c_in * tn * 2
    c_prev, widest = c_in, c_in
    for c in mlp_out_dims:
        per_b += tn * c * cdt_bytes
        per_b += c * c_prev * 2
        widest = max(widest, c)
        c_prev = c
    per_b += tn * widest * 4

    if tile_batch is not None:
        tb = int(tile_batch)
    else:
        tb = int(act_budget // max(per_b, 1))
    tb = max(1, min(tb, B))
    if B >= 8:
        tb = max(8, (tb // 8) * 8)                     # sublane-aligned output tiles
        if min_batch_steps > 1 and B >= 8 * min_batch_steps:
            cap = max(8, (pl.cdiv(B, min_batch_steps) // 8) * 8)
            tb = min(tb, cap)                          # >= 2 steps for megacore
    else:
        tb = B                                         # single step; block == full dim
    b_pad = pl.cdiv(B, tb) * tb
    return tb, b_pad, tn, n_pad


def pointnet_forward(data, mlp_params, fc_params,
                     mlp_dolastrelu=False, fc_dolastrelu=False,
                     tile_batch=None, tile_points=None,
                     matmul_dtype=jnp.bfloat16, compute_dtype=None):
    """data: (B, N, C_in) float32.  *_params: list of (W:(Cin,Cout), b:(1,Cout))."""
    B, N, C_in = data.shape
    n_mlp, n_fc = len(mlp_params), len(fc_params)
    c_mlp = mlp_params[-1][0].shape[1]
    c_out = fc_params[-1][0].shape[1]

    plan = _device_plan()
    if compute_dtype is None:
        compute_dtype = plan["compute_dtype"]

    mlp_out_dims = [w.shape[1] for (w, _) in mlp_params]
    tb, b_pad, tn, n_pad = _choose_tiles(
        B, N, C_in, mlp_out_dims, plan["act_budget"], plan["min_batch_steps"],
        compute_dtype, tile_batch, tile_points)

    # ---- Input: bf16, points-on-lanes (B, C_in, N). Points edge-replicated up
    # to a multiple of tn (duplicated points never change the max-pool); batch
    # zero-padded to a multiple of tb (padded rows are sliced off the output).
    x = jnp.transpose(data.astype(matmul_dtype), (0, 2, 1))
    if n_pad != N:
        x = jnp.pad(x, ((0, 0), (0, 0), (0, n_pad - N)), mode="edge")
    if b_pad != B:
        x = jnp.pad(x, ((0, b_pad - B), (0, 0), (0, 0)))

    # ---- Lane-dense output: pad the last FC layer to a multiple of 128 lanes.
    c_pad = pl.cdiv(c_out, 128) * 128
    fc_params = list(fc_params)
    if c_pad != c_out:
        w_last, b_last = fc_params[-1]
        fc_params[-1] = (jnp.pad(w_last, ((0, 0), (0, c_pad - c_out))),
                         jnp.pad(b_last, ((0, 0), (0, c_pad - c_out))))

    # ---- Flatten params in kernel order; weights pre-cast to the matmul dtype.
    flat_params = []
    for i, (w, b) in enumerate(mlp_params):
        flat_params.append(jnp.transpose(w).astype(matmul_dtype))        # (Cout, Cin)
        if i < n_mlp - 1:
            flat_params.append(b.reshape(1, -1, 1).astype(compute_dtype))  # (1, C, 1)
        else:
            flat_params.append(b.reshape(1, -1).astype(jnp.float32))       # deferred bias
    for (w, b) in fc_params:
        flat_params.append(w.astype(matmul_dtype))
        flat_params.append(b.reshape(1, -1).astype(compute_dtype))

    kernel = _make_pointnet_kernel(n_mlp, n_fc, mlp_dolastrelu, fc_dolastrelu,
                                   tb, compute_dtype, matmul_dtype)

    grid = (b_pad // tb, n_pad // tn)
    param_specs = [pl.BlockSpec(p.shape, lambda i, k, _nd=p.ndim: (0,) * _nd)
                   for p in flat_params]

    out = pl.pallas_call(
        kernel,
        out_shape=jax.ShapeDtypeStruct((b_pad, c_pad), jnp.float32),
        grid=grid,
        in_specs=[pl.BlockSpec((tb, C_in, tn), lambda i, k: (i, 0, k))] + param_specs,
        out_specs=pl.BlockSpec((tb, c_pad), lambda i, k: (i, 0)),
        scratch_shapes=[pltpu.VMEM((tb, c_mlp), jnp.float32)],
        compiler_params=pltpu.CompilerParams(
            dimension_semantics=("parallel", "arbitrary"),
            vmem_limit_bytes=plan["vmem_limit"],
        ),
    )(x, *flat_params)

    # Slice off batch padding and output-channel padding.
    return out[:B, :c_out].astype(data.dtype)


def _init_linear(key, c_in, c_out):
    """Deterministic torch.nn.Linear-style init: U(-1/sqrt(fan_in), +1/sqrt(fan_in))."""
    kw, kb = jax.random.split(key)
    bound = 1.0 / jnp.sqrt(jnp.float32(c_in))
    w = jax.random.uniform(kw, (c_in, c_out), jnp.float32, -bound, bound)
    b = jax.random.uniform(kb, (1, c_out), jnp.float32, -bound, bound)
    return w, b


def _init_mlp(key, dims):
    params = []
    keys = jax.random.split(key, len(dims) - 1)
    for i in range(len(dims) - 1):
        params.append(_init_linear(keys[i], dims[i], dims[i + 1]))
    return params


def _reference_forward(data, mlp_params, fc_params,
                       mlp_dolastrelu=False, fc_dolastrelu=False):
    """Pure-JAX (f32) reference mirroring the PyTorch module."""
    h = data
    for i, (w, b) in enumerate(mlp_params):
        h = h @ w + b
        if (i < len(mlp_params) - 1) or mlp_dolastrelu:
            h = jnp.maximum(h, 0.0)
    g = jnp.max(h, axis=1)  # GlobalPool over points axis
    for i, (w, b) in enumerate(fc_params):
        g = g @ w + b[0]
        if (i < len(fc_params) - 1) or fc_dolastrelu:
            g = jnp.maximum(g, 0.0)
    return g


if __name__ == "__main__":
    # Small synthetic config consistent with the module:
    #   net_config = {'mlp_dims': [4, 32, 64], 'fc_dims': [64, 32, 16]}
    mlp_dims = [4, 32, 64]
    fc_dims = [64, 32, 16]
    B, N = 2, 64

    root = jax.random.PRNGKey(0)
    k_data, k_mlp, k_fc = jax.random.split(root, 3)

    data = jax.random.normal(k_data, (B, N, mlp_dims[0]), jnp.float32)
    mlp_params = _init_mlp(k_mlp, mlp_dims)
    fc_params = _init_mlp(k_fc, fc_dims)

    out = pointnet_forward(data, mlp_params, fc_params)
    out = jax.block_until_ready(out)

    ref = _reference_forward(data, mlp_params, fc_params)
    assert out.shape == (B, fc_dims[-1]), out.shape
    # bf16 matmuls (f32 accumulation) + bf16 elementwise on v6e/v7x -> allow
    # bf16-level tolerance vs the f32 reference.
    assert jnp.allclose(out, ref, atol=5e-2, rtol=5e-2), (
        "mismatch vs reference; max abs diff = %g" % float(jnp.max(jnp.abs(out - ref))))

    print("KERNEL_OK")
</pallas_src>

<mosaic_0001>
module attributes {stable_mosaic.version = 11 : i64} {
  func.func @kernel(%arg0: i32, %arg1: i32, %arg2: memref<2x4x128xbf16, #tpu.memory_space<vmem>>, %arg3: memref<32x4xbf16, #tpu.memory_space<vmem>>, %arg4: memref<1x32x1xbf16, #tpu.memory_space<vmem>>, %arg5: memref<64x32xbf16, #tpu.memory_space<vmem>>, %arg6: memref<1x64xf32, #tpu.memory_space<vmem>>, %arg7: memref<64x32xbf16, #tpu.memory_space<vmem>>, %arg8: memref<1x32xbf16, #tpu.memory_space<vmem>>, %arg9: memref<32x128xbf16, #tpu.memory_space<vmem>>, %arg10: memref<1x128xbf16, #tpu.memory_space<vmem>>, %arg11: memref<2x128xf32, #tpu.memory_space<vmem>>, %arg12: memref<2x64xf32, #tpu.memory_space<vmem>>) attributes {dimension_semantics = [#tpu.dimension_semantics<parallel>, #tpu.dimension_semantics<arbitrary>], iteration_bounds = array<i64: 1, 1>, scalar_prefetch = 0 : i64, scratch_operands = 1 : i64, tpu.core_type = #tpu.core_type<tc>, window_params = [{transform_indices = @transform_0, window_bounds = array<i64: 2, 4, 128>}, {pipeline_mode = #tpu.pipeline_mode<synchronous>, transform_indices = @transform_1, window_bounds = array<i64: 32, 4>}, {pipeline_mode = #tpu.pipeline_mode<synchronous>, transform_indices = @transform_2, window_bounds = array<i64: 1, 32, 1>}, {pipeline_mode = #tpu.pipeline_mode<synchronous>, transform_indices = @transform_3, window_bounds = array<i64: 64, 32>}, {pipeline_mode = #tpu.pipeline_mode<synchronous>, transform_indices = @transform_4, window_bounds = array<i64: 1, 64>}, {pipeline_mode = #tpu.pipeline_mode<synchronous>, transform_indices = @transform_5, window_bounds = array<i64: 64, 32>}, {pipeline_mode = #tpu.pipeline_mode<synchronous>, transform_indices = @transform_6, window_bounds = array<i64: 1, 32>}, {pipeline_mode = #tpu.pipeline_mode<synchronous>, transform_indices = @transform_7, window_bounds = array<i64: 32, 128>}, {pipeline_mode = #tpu.pipeline_mode<synchronous>, transform_indices = @transform_8, window_bounds = array<i64: 1, 128>}, {transform_indices = @transform_9, window_bounds = array<i64: 2, 128>}]} {
    %c0_i32 = arith.constant 0 : i32
    %0 = arith.cmpi eq, %arg1, %c0_i32 : i32
    %1 = arith.extui %0 : i1 to i32
    %c0_i32_0 = arith.constant 0 : i32
    %2 = arith.cmpi ne, %1, %c0_i32_0 : i32
    scf.if %2 {
      %cst_19 = arith.constant 0xFF800000 : f32
      %25 = vector.broadcast %cst_19 : f32 to vector<2x64xf32>
      %c0_20 = arith.constant 0 : index
      %c0_21 = arith.constant 0 : index
      %26 = vector.load %arg12[%c0_20, %c0_21] : memref<2x64xf32, #tpu.memory_space<vmem>>, vector<2x64xf32>
      tpu.vector_store %arg12[%c0_20, %c0_21], %25 {strides = array<i32>} : memref<2x64xf32, #tpu.memory_space<vmem>>, vector<2x64xf32>,
    } else {
    }
    %c0 = arith.constant 0 : index
    %c0_1 = arith.constant 0 : index
    %c0_2 = arith.constant 0 : index
    %3 = vector.load %arg2[%c0, %c0_1, %c0_2] : memref<2x4x128xbf16, #tpu.memory_space<vmem>>, vector<2x4x128xbf16>
    %c0_3 = arith.constant 0 : index
    %c0_4 = arith.constant 0 : index
    %4 = vector.load %arg3[%c0_3, %c0_4] : memref<32x4xbf16, #tpu.memory_space<vmem>>, vector<32x4xbf16>
    %5 = vector.shape_cast %4 : vector<32x4xbf16> to vector<1x32x4xbf16>
    %6 = vector.broadcast %5 : vector<1x32x4xbf16> to vector<2x32x4xbf16>
    "tpu.trace_start"() <{level = 10 : i32, message = "boc,bcn->bon"}> : () -> ()
    %cst = arith.constant dense<0.000000e+00> : vector<2x32x128xf32>
    %7 = tpu.matmul %6, %3, %cst {dimension_numbers = #tpu.dot_dimension_numbers<[2], [1], [1], [2], [0, 0, 0, 1, 1, 2], [0], [0]>} : vector<2x32x4xbf16>, vector<2x4x128xbf16>, vector<2x32x128xf32> -> vector<2x32x128xf32>
    "tpu.trace_stop"() : () -> ()
    %c0_5 = arith.constant 0 : index
    %c0_6 = arith.constant 0 : index
    %c0_7 = arith.constant 0 : index
    %8 = vector.load %arg4[%c0_5, %c0_6, %c0_7] : memref<1x32x1xbf16, #tpu.memory_space<vmem>>, vector<1x32x1xbf16>
    %9 = arith.truncf %7 : vector<2x32x128xf32> to vector<2x32x128xbf16>
    %10 = vector.broadcast %8 : vector<1x32x1xbf16> to vector<2x32x128xbf16>
    %11 = arith.addf %9, %10 : vector<2x32x128xbf16>
    %cst_8 = arith.constant 0.000000e+00 : bf16
    %12 = vector.broadcast %cst_8 : bf16 to vector<2x32x128xbf16>
    %13 = arith.maximumf %11, %12 : vector<2x32x128xbf16>
    %c0_9 = arith.constant 0 : index
    %c0_10 = arith.constant 0 : index
    %14 = vector.load %arg5[%c0_9, %c0_10] : memref<64x32xbf16, #tpu.memory_space<vmem>>, vector<64x32xbf16>
    %15 = vector.shape_cast %14 : vector<64x32xbf16> to vector<1x64x32xbf16>
    %16 = vector.broadcast %15 : vector<1x64x32xbf16> to vector<2x64x32xbf16>
    "tpu.trace_start"() <{level = 10 : i32, message = "boc,bcn->bon"}> : () -> ()
    %cst_11 = arith.constant dense<0.000000e+00> : vector<2x64x128xf32>
    %17 = tpu.matmul %16, %13, %cst_11 {dimension_numbers = #tpu.dot_dimension_numbers<[2], [1], [1], [2], [0, 0, 0, 1, 1, 2], [0], [0]>} : vector<2x64x32xbf16>, vector<2x32x128xbf16>, vector<2x64x128xf32> -> vector<2x64x128xf32>
    "tpu.trace_stop"() : () -> ()
    %c0_12 = arith.constant 0 : index
    %c0_13 = arith.constant 0 : index
    %18 = vector.load %arg12[%c0_12, %c0_13] : memref<2x64xf32, #tpu.memory_space<vmem>>, vector<2x64xf32>
    %cst_14 = arith.constant dense<0xFF800000> : vector<2x64xf32>
    %19 = vector.multi_reduction <maximumf>, %17, %cst_14 [2] : vector<2x64x128xf32> to vector<2x64xf32>
    %20 = arith.maximumf %18, %19 : vector<2x64xf32>
    %c0_15 = arith.constant 0 : index
    %c0_16 = arith.constant 0 : index
    %21 = vector.load %arg12[%c0_15, %c0_16] : memref<2x64xf32, #tpu.memory_space<vmem>>, vector<2x64xf32>
    tpu.vector_store %arg12[%c0_15, %c0_16], %20 {strides = array<i32>} : memref<2x64xf32, #tpu.memory_space<vmem>>, vector<2x64xf32>,
    %c0_i32_17 = arith.constant 0 : i32
    %22 = arith.cmpi eq, %arg1, %c0_i32_17 : i32
    %23 = arith.extui %22 : i1 to i32
    %c0_i32_18 = arith.constant 0 : i32
    %24 = arith.cmpi ne, %23, %c0_i32_18 : i32
    scf.if %24 {
      %c0_19 = arith.constant 0 : index
      %c0_20 = arith.constant 0 : index
      %25 = vector.load %arg12[%c0_19, %c0_20] : memref<2x64xf32, #tpu.memory_space<vmem>>, vector<2x64xf32>
      %c0_21 = arith.constant 0 : index
      %c0_22 = arith.constant 0 : index
      %26 = vector.load %arg6[%c0_21, %c0_22] : memref<1x64xf32, #tpu.memory_space<vmem>>, vector<1x64xf32>
      %27 = vector.broadcast %26 : vector<1x64xf32> to vector<2x64xf32>
      %28 = arith.addf %25, %27 : vector<2x64xf32>
      %29 = arith.truncf %28 : vector<2x64xf32> to vector<2x64xbf16>
      %c0_23 = arith.constant 0 : index
      %c0_24 = arith.constant 0 : index
      %30 = vector.load %arg7[%c0_23, %c0_24] : memref<64x32xbf16, #tpu.memory_space<vmem>>, vector<64x32xbf16>
      %c0_25 = arith.constant 0 : index
      %c0_26 = arith.constant 0 : index
      %31 = vector.load %arg8[%c0_25, %c0_26] : memref<1x32xbf16, #tpu.memory_space<vmem>>, vector<1x32xbf16>
      %cst_27 = arith.constant dense<0.000000e+00> : vector<2x32xf32>
      %32 = tpu.matmul %29, %30, %cst_27 {dimension_numbers = #tpu.dot_dimension_numbers<[1], [0], [0], [1], [0, 0, 1, 1], [], []>} : vector<2x64xbf16>, vector<64x32xbf16>, vector<2x32xf32> -> vector<2x32xf32>
      %33 = arith.truncf %32 : vector<2x32xf32> to vector<2x32xbf16>
      %34 = vector.broadcast %31 : vector<1x32xbf16> to vector<2x32xbf16>
      %35 = arith.addf %33, %34 : vector<2x32xbf16>
      %cst_28 = arith.constant 0.000000e+00 : bf16
      %36 = vector.broadcast %cst_28 : bf16 to vector<2x32xbf16>
      %37 = arith.maximumf %35, %36 : vector<2x32xbf16>
      %c0_29 = arith.constant 0 : index
      %c0_30 = arith.constant 0 : index
      %38 = vector.load %arg9[%c0_29, %c0_30] : memref<32x128xbf16, #tpu.memory_space<vmem>>, vector<32x128xbf16>
      %c0_31 = arith.constant 0 : index
      %c0_32 = arith.constant 0 : index
      %39 = vector.load %arg10[%c0_31, %c0_32] : memref<1x128xbf16, #tpu.memory_space<vmem>>, vector<1x128xbf16>
      %cst_33 = arith.constant dense<0.000000e+00> : vector<2x128xf32>
      %40 = tpu.matmul %37, %38, %cst_33 {dimension_numbers = #tpu.dot_dimension_numbers<[1], [0], [0], [1], [0, 0, 1, 1], [], []>} : vector<2x32xbf16>, vector<32x128xbf16>, vector<2x128xf32> -> vector<2x128xf32>
      %41 = arith.truncf %40 : vector<2x128xf32> to vector<2x128xbf16>
      %42 = vector.broadcast %39 : vector<1x128xbf16> to vector<2x128xbf16>
      %43 = arith.addf %41, %42 : vector<2x128xbf16>
      %44 = arith.extf %43 : vector<2x128xbf16> to vector<2x128xf32>
      %c0_34 = arith.constant 0 : index
      %c0_35 = arith.constant 0 : index
      %45 = vector.load %arg11[%c0_34, %c0_35] : memref<2x128xf32, #tpu.memory_space<vmem>>, vector<2x128xf32>
      tpu.vector_store %arg11[%c0_34, %c0_35], %44 {strides = array<i32>} : memref<2x128xf32, #tpu.memory_space<vmem>>, vector<2x128xf32>,
    } else {
    }
    return
  }
  func.func @transform_0(%arg0: i32, %arg1: i32) -> (i32, i32, i32) {
    %c0_i32 = arith.constant 0 : i32
    %c0_i32_0 = arith.constant 0 : i32
    return %arg0, %c0_i32, %arg1 : i32, i32, i32
  }
  func.func @transform_1(%arg0: i32, %arg1: i32) -> (i32, i32) {
    %c0_i32 = arith.constant 0 : i32
    %c0_i32_0 = arith.constant 0 : i32
    %c0_i32_1 = arith.constant 0 : i32
    return %c0_i32, %c0_i32_0 : i32, i32
  }
  func.func @transform_2(%arg0: i32, %arg1: i32) -> (i32, i32, i32) {
    %c0_i32 = arith.constant 0 : i32
    %c0_i32_0 = arith.constant 0 : i32
    %c0_i32_1 = arith.constant 0 : i32
    %c0_i32_2 = arith.constant 0 : i32
    return %c0_i32, %c0_i32_0, %c0_i32_1 : i32, i32, i32
  }
  func.func @transform_3(%arg0: i32, %arg1: i32) -> (i32, i32) {
    %c0_i32 = arith.constant 0 : i32
    %c0_i32_0 = arith.constant 0 : i32
    %c0_i32_1 = arith.constant 0 : i32
    return %c0_i32, %c0_i32_0 : i32, i32
  }
  func.func @transform_4(%arg0: i32, %arg1: i32) -> (i32, i32) {
    %c0_i32 = arith.constant 0 : i32
    %c0_i32_0 = arith.constant 0 : i32
    %c0_i32_1 = arith.constant 0 : i32
    return %c0_i32, %c0_i32_0 : i32, i32
  }
  func.func @transform_5(%arg0: i32, %arg1: i32) -> (i32, i32) {
    %c0_i32 = arith.constant 0 : i32
    %c0_i32_0 = arith.constant 0 : i32
    %c0_i32_1 = arith.constant 0 : i32
    return %c0_i32, %c0_i32_0 : i32, i32
  }
  func.func @transform_6(%arg0: i32, %arg1: i32) -> (i32, i32) {
    %c0_i32 = arith.constant 0 : i32
    %c0_i32_0 = arith.constant 0 : i32
    %c0_i32_1 = arith.constant 0 : i32
    return %c0_i32, %c0_i32_0 : i32, i32
  }
  func.func @transform_7(%arg0: i32, %arg1: i32) -> (i32, i32) {
    %c0_i32 = arith.constant 0 : i32
    %c0_i32_0 = arith.constant 0 : i32
    %c0_i32_1 = arith.constant 0 : i32
    return %c0_i32, %c0_i32_0 : i32, i32
  }
  func.func @transform_8(%arg0: i32, %arg1: i32) -> (i32, i32) {
    %c0_i32 = arith.constant 0 : i32
    %c0_i32_0 = arith.constant 0 : i32
    %c0_i32_1 = arith.constant 0 : i32
    return %c0_i32, %c0_i32_0 : i32, i32
  }
  func.func @transform_9(%arg0: i32, %arg1: i32) -> (i32, i32) {
    %c0_i32 = arith.constant 0 : i32
    %c0_i32_0 = arith.constant 0 : i32
    return %arg0, %c0_i32 : i32, i32
  }
}

</mosaic_0001>

<llo_original>
// kernel: tpu_custom_call.1
$region0: #{tpu_custom_call.1}
  #allocation0 [shape = 'u32[]', space=smem, size = 0x4, offset = 0x4, fixed_abs, tag = 'smem constant byte address 0x4 - core index']
  #allocation1 [shape = 'u32[144,128]{1,0:T(1,128)}', space=vmem, size = 0x12000, scoped, tag = 'internal scratch']
  #allocation2 [shape = 'f32[2,64]{1,0:T(2,128)}', space=vmem, size = 0x400, scoped, tag = 'scratch operand']
  %s0 = inlined_call_operand.hbm [shape: bf16[2,4,128], index: 0, kind: input, shape index: {}]
  %s1 = inlined_call_operand.hbm [shape: bf16[32,4], index: 1, kind: input, shape index: {}]
  %s2 = inlined_call_operand.hbm [shape: bf16[1,32,1], index: 2, kind: input, shape index: {}]
  %s3 = inlined_call_operand.hbm [shape: bf16[64,32], index: 3, kind: input, shape index: {}]
  %s4 = inlined_call_operand.hbm [shape: f32[1,64], index: 4, kind: input, shape index: {}]
  %s5 = inlined_call_operand.hbm [shape: bf16[64,32], index: 5, kind: input, shape index: {}]
  %s6 = inlined_call_operand.hbm [shape: bf16[1,32], index: 6, kind: input, shape index: {}]
  %s7 = inlined_call_operand.hbm [shape: bf16[32,128], index: 7, kind: input, shape index: {}]
  %s8 = inlined_call_operand.hbm [shape: bf16[1,128], index: 8, kind: input, shape index: {}]
  %s9 = inlined_call_operand.hbm [shape: f32[2,128], index: 9, kind: output, shape index: {}]
  %s10 = sld [smem:[#allocation0]]
  $region90: #{tpu_custom_call.1} parent=0
    _
  %s12 = ssub.s32 1, %s10
  %s13 = scalar_select 0, %s12, %s10
  $region1: #{tpu_custom_call.1} parent=0
    #allocation3 [shape = 'u8[2048]{0}', space=vmem, size = 0x800, scoped, tag = 'input window, operand 0, single buffered']
    #allocation4 [shape = 's32[1]{0}', space=sflag, size = 0x4, scoped, tag = 'scoped memory for tpu_custom_call.1']
    #allocation5 [shape = 's32[1]{0}', space=sflag, size = 0x4, scoped, tag = 'scoped memory for tpu_custom_call.1']
    #allocation6 [shape = 'u8[8192]{0}', space=vmem, size = 0x2000, scoped, tag = 'input window, operand 1, single buffered']
    #allocation7 [shape = 's32[1]{0}', space=sflag, size = 0x4, scoped, tag = 'scoped memory for tpu_custom_call.1']
    #allocation8 [shape = 'u8[8192]{0}', space=vmem, size = 0x2000, scoped, tag = 'input window, operand 2, single buffered']
    #allocation9 [shape = 'u8[16384]{0}', space=vmem, size = 0x4000, scoped, tag = 'input window, operand 3, single buffered']
    #allocation10 [shape = 's32[1]{0}', space=sflag, size = 0x4, scoped, tag = 'scoped memory for tpu_custom_call.1']
    #allocation11 [shape = 'u8[512]{0}', space=vmem, size = 0x400, scoped, tag = 'input window, operand 4, single buffered']
    #allocation12 [shape = 'u8[16384]{0}', space=vmem, size = 0x4000, scoped, tag = 'input window, operand 5, single buffered']
    #allocation13 [shape = 's32[1]{0}', space=sflag, size = 0x4, scoped, tag = 'scoped memory for tpu_custom_call.1']
    #allocation14 [shape = 'u8[512]{0}', space=vmem, size = 0x400, scoped, tag = 'input window, operand 6, single buffered']
    #allocation15 [shape = 'u8[8192]{0}', space=vmem, size = 0x2000, scoped, tag = 'input window, operand 7, single buffered']
    #allocation16 [shape = 's32[1]{0}', space=sflag, size = 0x4, scoped, tag = 'scoped memory for tpu_custom_call.1']
    #allocation17 [shape = 'u8[512]{0}', space=vmem, size = 0x400, scoped, tag = 'input window, operand 8, single buffered']
    #allocation18 [shape = 'u8[1024]{0}', space=vmem, size = 0x400, scoped, tag = 'output window, operand 0, single buffered']
    %14 = vsyncpa [#allocation4], 0
    %15 = vsyncpa [#allocation7], 0
    %16 = vsyncpa [#allocation10], 0
    %17 = vsyncpa [#allocation13], 0
    %18 = vsyncpa [#allocation16], 0
    %19 = vsyncpa [#allocation5], 0
    // Predicated region
    $region2: #{tpu_custom_call.1} parent=1 // pred_check
      _
    $region3: #{tpu_custom_call.1} parent=1 // pred_check_branch
      %21 = sbr.rel (0) target = $region5
    $region4: #{tpu_custom_call.1} parent=1 // pred_region
      %s23 = ssub.s32 64, 64
      %24 = vsyncadd [#allocation4], %s23
      %s25 = sshll.u32 [#allocation3], 4
      %s26 = int_to_ptr.vmem [resolvable:$true] %s25
      %31 = dma.hbm_to_vmem [thread:$0]  %s0, 64, %s26, [#allocation4], 32, 32, 2
    $region5: #{tpu_custom_call.1} parent=1 // pred_fallthru
      _
    // Predicated region
    $region6: #{tpu_custom_call.1} parent=1 // pred_check
      _
    $region7: #{tpu_custom_call.1} parent=1 // pred_check_branch
      %33 = sbr.rel (0) target = $region9
    $region8: #{tpu_custom_call.1} parent=1 // pred_region
      %s35 = ssub.s32 256, 256
      %36 = vsyncadd [#allocation7], %s35
      %s37 = sshll.u32 [#allocation6], 4
      %s38 = int_to_ptr.vmem [resolvable:$true] %s37
      %43 = dma.hbm_to_vmem [thread:$0]  %s1, 256, %s38, [#allocation7], 64, 64, 4
    $region9: #{tpu_custom_call.1} parent=1 // pred_fallthru
      _
    // Predicated region
    $region10: #{tpu_custom_call.1} parent=1 // pred_check
      _
    $region11: #{tpu_custom_call.1} parent=1 // pred_check_branch
      %45 = sbr.rel (0) target = $region13
    $region12: #{tpu_custom_call.1} parent=1 // pred_region
      %s47 = ssub.s32 256, 256
      %48 = vsyncadd [#allocation7], %s47
      %s49 = sshll.u32 [#allocation8], 4
      %s50 = int_to_ptr.vmem [resolvable:$true] %s49
      %55 = dma.hbm_to_vmem [thread:$0]  %s2, 256, %s50, [#allocation7], 64, 64, 4
    $region13: #{tpu_custom_call.1} parent=1 // pred_fallthru
      _
    // Predicated region
    $region14: #{tpu_custom_call.1} parent=1 // pred_check
      _
    $region15: #{tpu_custom_call.1} parent=1 // pred_check_branch
      %57 = sbr.rel (0) target = $region17
    $region16: #{tpu_custom_call.1} parent=1 // pred_region
      %s59 = ssub.s32 512, 512
      %60 = vsyncadd [#allocation10], %s59
      %s61 = sshll.u32 [#allocation9], 4
      %s62 = int_to_ptr.vmem [resolvable:$true] %s61
      %67 = dma.hbm_to_vmem [thread:$0]  %s3, 512, %s62, [#allocation10], 64, 64, 4
    $region17: #{tpu_custom_call.1} parent=1 // pred_fallthru
      _
    // Predicated region
    $region18: #{tpu_custom_call.1} parent=1 // pred_check
      _
    $region19: #{tpu_custom_call.1} parent=1 // pred_check_branch
      %69 = sbr.rel (0) target = $region21
    $region20: #{tpu_custom_call.1} parent=1 // pred_region
      %s71 = ssub.s32 16, 16
      %72 = vsyncadd [#allocation10], %s71
      %s74 = sshll.u32 [#allocation11], 4
      %s75 = int_to_ptr.vmem [resolvable:$true] %s74
      %77 = dma.hbm_to_vmem [thread:$0]  %s4, 16, %s75, [#allocation10]
    $region21: #{tpu_custom_call.1} parent=1 // pred_fallthru
      _
    // Predicated region
    $region22: #{tpu_custom_call.1} parent=1 // pred_check
      _
    $region23: #{tpu_custom_call.1} parent=1 // pred_check_branch
      %79 = sbr.rel (0) target = $region25
    $region24: #{tpu_custom_call.1} parent=1 // pred_region
      %s81 = ssub.s32 512, 512
      %82 = vsyncadd [#allocation13], %s81
      %s83 = sshll.u32 [#allocation12], 4
      %s84 = int_to_ptr.vmem [resolvable:$true] %s83
      %89 = dma.hbm_to_vmem [thread:$0]  %s5, 512, %s84, [#allocation13], 64, 64, 4
    $region25: #{tpu_custom_call.1} parent=1 // pred_fallthru
      _
    // Predicated region
    $region26: #{tpu_custom_call.1} parent=1 // pred_check
      _
    $region27: #{tpu_custom_call.1} parent=1 // pred_check_branch
      %91 = sbr.rel (0) target = $region29
    $region28: #{tpu_custom_call.1} parent=1 // pred_region
      %s93 = ssub.s32 16, 16
      %94 = vsyncadd [#allocation13], %s93
      %s96 = sshll.u32 [#allocation14], 4
      %s97 = int_to_ptr.vmem [resolvable:$true] %s96
      %99 = dma.hbm_to_vmem [thread:$0]  %s6, 16, %s97, [#allocation13]
    $region29: #{tpu_custom_call.1} parent=1 // pred_fallthru
      _
    // Predicated region
    $region30: #{tpu_custom_call.1} parent=1 // pred_check
      _
    $region31: #{tpu_custom_call.1} parent=1 // pred_check_branch
      %101 = sbr.rel (0) target = $region33
    $region32: #{tpu_custom_call.1} parent=1 // pred_region
      %s103 = ssub.s32 256, 256
      %104 = vsyncadd [#allocation16], %s103
      %s105 = sshll.u32 [#allocation15], 4
      %s106 = int_to_ptr.vmem [resolvable:$true] %s105
      %111 = dma.hbm_to_vmem [thread:$0]  %s7, 256, %s106, [#allocation16], 64, 64, 4
    $region33: #{tpu_custom_call.1} parent=1 // pred_fallthru
      _
    // Predicated region
    $region34: #{tpu_custom_call.1} parent=1 // pred_check
      _
    $region35: #{tpu_custom_call.1} parent=1 // pred_check_branch
      %113 = sbr.rel (0) target = $region37
    $region36: #{tpu_custom_call.1} parent=1 // pred_region
      %s115 = ssub.s32 16, 16
      %116 = vsyncadd [#allocation16], %s115
      %s118 = sshll.u32 [#allocation17], 4
      %s119 = int_to_ptr.vmem [resolvable:$true] %s118
      %121 = dma.hbm_to_vmem [thread:$0]  %s8, 16, %s119, [#allocation16]
    $region37: #{tpu_custom_call.1} parent=1 // pred_fallthru
      _
    // Predicated region
    $region38: #{tpu_custom_call.1} parent=1 // pred_check
      _
    $region39: #{tpu_custom_call.1} parent=1 // pred_check_branch
      %123 = sbr.rel (0) target = $region41
    $region40: #{tpu_custom_call.1} parent=1 // pred_region
      %124 = dma.done [#allocation4], 64
    $region41: #{tpu_custom_call.1} parent=1 // pred_fallthru
      _
    // Predicated region
    $region42: #{tpu_custom_call.1} parent=1 // pred_check
      _
    $region43: #{tpu_custom_call.1} parent=1 // pred_check_branch
      %126 = sbr.rel (0) target = $region45
    $region44: #{tpu_custom_call.1} parent=1 // pred_region
      %127 = dma.done [#allocation7], 256
    $region45: #{tpu_custom_call.1} parent=1 // pred_fallthru
      _
    // Predicated region
    $region46: #{tpu_custom_call.1} parent=1 // pred_check
      _
    $region47: #{tpu_custom_call.1} parent=1 // pred_check_branch
      %129 = sbr.rel (0) target = $region49
    $region48: #{tpu_custom_call.1} parent=1 // pred_region
      %130 = dma.done [#allocation7], 256
    $region49: #{tpu_custom_call.1} parent=1 // pred_fallthru
      _
    // Predicated region
    $region50: #{tpu_custom_call.1} parent=1 // pred_check
      _
    $region51: #{tpu_custom_call.1} parent=1 // pred_check_branch
      %132 = sbr.rel (0) target = $region53
    $region52: #{tpu_custom_call.1} parent=1 // pred_region
      %133 = dma.done [#allocation10], 512
    $region53: #{tpu_custom_call.1} parent=1 // pred_fallthru
      _
    // Predicated region
    $region54: #{tpu_custom_call.1} parent=1 // pred_check
      _
    $region55: #{tpu_custom_call.1} parent=1 // pred_check_branch
      %135 = sbr.rel (0) target = $region57
    $region56: #{tpu_custom_call.1} parent=1 // pred_region
      %136 = dma.done [#allocation10], 16
    $region57: #{tpu_custom_call.1} parent=1 // pred_fallthru
      _
    // Predicated region
    $region58: #{tpu_custom_call.1} parent=1 // pred_check
      _
    $region59: #{tpu_custom_call.1} parent=1 // pred_check_branch
      %138 = sbr.rel (0) target = $region61
    $region60: #{tpu_custom_call.1} parent=1 // pred_region
      %139 = dma.done [#allocation13], 512
    $region61: #{tpu_custom_call.1} parent=1 // pred_fallthru
      _
    // Predicated region
    $region62: #{tpu_custom_call.1} parent=1 // pred_check
      _
    $region63: #{tpu_custom_call.1} parent=1 // pred_check_branch
      %141 = sbr.rel (0) target = $region65
    $region64: #{tpu_custom_call.1} parent=1 // pred_region
      %142 = dma.done [#allocation13], 16
    $region65: #{tpu_custom_call.1} parent=1 // pred_fallthru
      _
    // Predicated region
    $region66: #{tpu_custom_call.1} parent=1 // pred_check
      _
    $region67: #{tpu_custom_call.1} parent=1 // pred_check_branch
      %144 = sbr.rel (0) target = $region69
    $region68: #{tpu_custom_call.1} parent=1 // pred_region
      %145 = dma.done [#allocation16], 256
    $region69: #{tpu_custom_call.1} parent=1 // pred_fallthru
      _
    // Predicated region
    $region70: #{tpu_custom_call.1} parent=1 // pred_check
      _
    $region71: #{tpu_custom_call.1} parent=1 // pred_check_branch
      %147 = sbr.rel (0) target = $region73
    $region72: #{tpu_custom_call.1} parent=1 // pred_region
      %148 = dma.done [#allocation16], 16
    $region73: #{tpu_custom_call.1} parent=1 // pred_fallthru
      _
    %p150 = scmp.eq.s32.totalorder 0, 0
    // Predicated region
    $region74: #{tpu_custom_call.1} parent=1 // pred_check
      %p151 = pneg %p150
    $region75: #{tpu_custom_call.1} parent=1 // pred_check_branch
      %153 = sbr.rel (%p151) target = $region77
    $region76: #{tpu_custom_call.1} parent=1 // pred_region
      %vm154 = vcmask 517120
      %155 = vst.msk [vmem:[#allocation2] sm:$0x3] %vm154, -inf
    $region77: #{tpu_custom_call.1} parent=1 // pred_fallthru
      _
    %v156 = vld [vmem:[#allocation3] sm:$0x3]
    %v157 = vld [vmem:[#allocation3 + $0x2] sm:$0x3]
    %v158 = vld [vmem:[#allocation6] sm:$0xf]
    %v159 = vld [vmem:[#allocation6 + $0x4] sm:$0xf]
    %v160 = vld [vmem:[#allocation6 + $0x8] sm:$0xf]
    %v161 = vld [vmem:[#allocation6 + $0xc] sm:$0xf]
    %v166 = vunpack.c.l.b16 %v158
    %v167 = vunpack.c.l.b16 %v159
    %v168 = vunpack.c.l.b16 %v160
    %v169 = vunpack.c.l.b16 %v161
    %v170 = vpack.c.b16 %v167, %v166
    %v171 = vpack.c.b16 %v169, %v168
    %vm172 = vcmask 31744
    %v174 = vsel %vm172, %v170, 0
    %v177 = vsel %vm172, %v171, 0
    %vm179 = vcmask 1041408
    %v181 = vsel %vm179, %v156, 0
    %183 = vmatprep.subr.bf16.mxu0 0
    %184 = vmatpush1.bf16.msra.mxu0 %v181
    %185 = vmatprep.subr.bf16.mxu0 0
    %186 = vmatpush1.bf16.msra.mxu0 0
    %187 = vmatprep.subr.bf16.mxu0 0
    %188 = vmatpush1.bf16.msra.mxu0 0
    %189 = vmatprep.subr.bf16.mxu0 0
    %190 = vmatpush1.bf16.msra.mxu0 0
    %191 = vmatprep.subr.bf16.mxu0 0
    %192 = vmatpush1.bf16.msra.mxu0 0
    %193 = vmatprep.subr.bf16.mxu0 0
    %194 = vmatpush1.bf16.msra.mxu0 0
    %195 = vmatprep.subr.bf16.mxu0 0
    %196 = vmatpush1.bf16.msra.mxu0 0
    %197 = vmatprep.subr.bf16.mxu0 0
    %198 = vmatpush1.bf16.msra.mxu0 0
    %199 = vmatprep.subr.bf16.mxu0 0
    %200 = vmatpush1.bf16.msra.mxu0 0
    %201 = vmatprep.subr.bf16.mxu0 0
    %202 = vmatpush1.bf16.msra.mxu0 0
    %203 = vmatprep.subr.bf16.mxu0 0
    %204 = vmatpush1.bf16.msra.mxu0 0
    %205 = vmatprep.subr.bf16.mxu0 0
    %206 = vmatpush1.bf16.msra.mxu0 0
    %207 = vmatprep.subr.bf16.mxu0 0
    %208 = vmatpush1.bf16.msra.mxu0 0
    %209 = vmatprep.subr.bf16.mxu0 0
    %210 = vmatpush1.bf16.msra.mxu0 0
    %211 = vmatprep.subr.bf16.mxu0 0
    %212 = vmatpush1.bf16.msra.mxu0 0
    %213 = vmatprep.subr.bf16.mxu0 0
    %214 = vmatpush1.bf16.msra.mxu0 0
    %215 = vmatprep.mubr.bf16.mxu0 0
    %216 = vmatmul.mubr.bf16.gmra.mrb[0].mxu0 %v174
    %v217 = vpop.f32.mrb[0].mxu0
    %v218 = vadd.f32 0.0, %v217
    %v219 = vpop.f32.mrb[0].mxu0
    %v220 = vpop.f32.mrb[0].mxu0
    %v221 = vadd.f32 0.0, %v220
    %v222 = vpop.f32.mrb[0].mxu0
    %223 = vmatprep.mubr.bf16.mxu0 0
    %224 = vmatmul.mubr.bf16.gmra.mrb[0].mxu0 %v177
    %v225 = vpop.f32.mrb[0].mxu0
    %v226 = vadd.f32 0.0, %v225
    %v227 = vpop.f32.mrb[0].mxu0
    %v228 = vpop.f32.mrb[0].mxu0
    %v229 = vadd.f32 0.0, %v228
    %v230 = vpop.f32.mrb[0].mxu0
    %231 = vdwg.mxu0
    %v233 = vsel %vm179, %v157, 0
    %235 = vmatprep.subr.bf16.mxu0 0
    %236 = vmatpush1.bf16.msra.mxu0 %v233
    %237 = vmatprep.subr.bf16.mxu0 0
    %238 = vmatpush1.bf16.msra.mxu0 0
    %239 = vmatprep.subr.bf16.mxu0 0
    %240 = vmatpush1.bf16.msra.mxu0 0
    %241 = vmatprep.subr.bf16.mxu0 0
    %242 = vmatpush1.bf16.msra.mxu0 0
    %243 = vmatprep.subr.bf16.mxu0 0
    %244 = vmatpush1.bf16.msra.mxu0 0
    %245 = vmatprep.subr.bf16.mxu0 0
    %246 = vmatpush1.bf16.msra.mxu0 0
    %247 = vmatprep.subr.bf16.mxu0 0
    %248 = vmatpush1.bf16.msra.mxu0 0
    %249 = vmatprep.subr.bf16.mxu0 0
    %250 = vmatpush1.bf16.msra.mxu0 0
    %251 = vmatprep.subr.bf16.mxu0 0
    %252 = vmatpush1.bf16.msra.mxu0 0
    %253 = vmatprep.subr.bf16.mxu0 0
    %254 = vmatpush1.bf16.msra.mxu0 0
    %255 = vmatprep.subr.bf16.mxu0 0
    %256 = vmatpush1.bf16.msra.mxu0 0
    %257 = vmatprep.subr.bf16.mxu0 0
    %258 = vmatpush1.bf16.msra.mxu0 0
    %259 = vmatprep.subr.bf16.mxu0 0
    %260 = vmatpush1.bf16.msra.mxu0 0
    %261 = vmatprep.subr.bf16.mxu0 0
    %262 = vmatpush1.bf16.msra.mxu0 0
    %263 = vmatprep.subr.bf16.mxu0 0
    %264 = vmatpush1.bf16.msra.mxu0 0
    %265 = vmatprep.subr.bf16.mxu0 0
    %266 = vmatpush1.bf16.msra.mxu0 0
    %267 = vmatprep.mubr.bf16.mxu0 0
    %268 = vmatmul.mubr.bf16.gmra.mrb[0].mxu0 %v174
    %v269 = vpop.f32.mrb[0].mxu0
    %v270 = vadd.f32 0.0, %v269
    %v271 = vpop.f32.mrb[0].mxu0
    %v272 = vpop.f32.mrb[0].mxu0
    %v273 = vadd.f32 0.0, %v272
    %v274 = vpop.f32.mrb[0].mxu0
    %275 = vmatprep.mubr.bf16.mxu0 0
    %276 = vmatmul.mubr.bf16.gmra.mrb[0].mxu0 %v177
    %v277 = vpop.f32.mrb[0].mxu0
    %v278 = vadd.f32 0.0, %v277
    %v279 = vpop.f32.mrb[0].mxu0
    %v280 = vpop.f32.mrb[0].mxu0
    %v281 = vadd.f32 0.0, %v280
    %v282 = vpop.f32.mrb[0].mxu0
    %283 = vdwg.mxu0
    %v284 = vld [vmem:[#allocation8] sm:$0xf]
    %v285 = vld [vmem:[#allocation8 + $0x4] sm:$0xf]
    %v286 = vld [vmem:[#allocation8 + $0x8] sm:$0xf]
    %v287 = vld [vmem:[#allocation8 + $0xc] sm:$0xf]
    %v288 = vpack.c.bf16 %v221, %v218
    %v289 = vpack.c.bf16 %v229, %v226
    %v290 = vpack.c.bf16 %v273, %v270
    %v291 = vpack.c.bf16 %v281, %v278
    %293 = vset.pattern.permute.xlu0 0
    %294 = vperm.xlu0 %293, %v284
    %v295 = vpop.permute.xlu0 %294
    %v298 = vunpack.c.l.s4 839922192
    %v299 = vunpack.c.0.s8 %v298
    %v300 = vlaneseq
    %v301 = vshrl.u32 %v300, 7
    %v302 = vsub.s32 %v299, %v301
    %v303 = vrot.slane %v295, %v302
    %305 = vset.pattern.permute.xlu0 0
    %306 = vperm.xlu0 %305, %v285
    %v307 = vpop.permute.xlu0 %306
    %v310 = vunpack.c.l.s4 839922192
    %v311 = vunpack.c.0.s8 %v310
    %v312 = vlaneseq
    %v313 = vshrl.u32 %v312, 7
    %v314 = vsub.s32 %v311, %v313
    %v315 = vrot.slane %v307, %v314
    %317 = vset.pattern.permute.xlu0 0
    %318 = vperm.xlu0 %317, %v286
    %v319 = vpop.permute.xlu0 %318
    %v322 = vunpack.c.l.s4 839922192
    %v323 = vunpack.c.0.s8 %v322
    %v324 = vlaneseq
    %v325 = vshrl.u32 %v324, 7
    %v326 = vsub.s32 %v323, %v325
    %v327 = vrot.slane %v319, %v326
    %329 = vset.pattern.permute.xlu0 0
    %330 = vperm.xlu0 %329, %v287
    %v331 = vpop.permute.xlu0 %330
    %v334 = vunpack.c.l.s4 839922192
    %v335 = vunpack.c.0.s8 %v334
    %v336 = vlaneseq
    %v337 = vshrl.u32 %v336, 7
    %v338 = vsub.s32 %v335, %v337
    %v339 = vrot.slane %v331, %v338
    %v344 = vunpack.c.l.b16 %v303
    %v345 = vunpack.c.l.b16 %v315
    %v346 = vunpack.c.l.b16 %v327
    %v347 = vunpack.c.l.b16 %v339
    %v348 = vpack.c.b16 %v345, %v344
    %v349 = vpack.c.b16 %v347, %v346
    %v352 = vadd.bf16 %v288, %v348
    %v353 = vadd.bf16 %v289, %v349
    %v354 = vadd.bf16 %v290, %v348
    %v355 = vadd.bf16 %v291, %v349
    %v356 = vmax.bf16 %v352, 0
    %v357 = vmax.bf16 %v353, 0
    %v358 = vmax.bf16 %v354, 0
    %v359 = vmax.bf16 %v355, 0
    %v360 = vld [vmem:[#allocation9] sm:$0xf]
    %v361 = vld [vmem:[#allocation9 + $0x4] sm:$0xf]
    %v362 = vld [vmem:[#allocation9 + $0x8] sm:$0xf]
    %v363 = vld [vmem:[#allocation9 + $0xc] sm:$0xf]
    %v364 = vld [vmem:[#allocation9 + $0x10] sm:$0xf]
    %v365 = vld [vmem:[#allocation9 + $0x14] sm:$0xf]
    %v366 = vld [vmem:[#allocation9 + $0x18] sm:$0xf]
    %v367 = vld [vmem:[#allocation9 + $0x1c] sm:$0xf]
    %v376 = vunpack.c.l.b16 %v360
    %v377 = vunpack.c.l.b16 %v361
    %v378 = vunpack.c.l.b16 %v362
    %v379 = vunpack.c.l.b16 %v363
    %v380 = vunpack.c.l.b16 %v364
    %v381 = vunpack.c.l.b16 %v365
    %v382 = vunpack.c.l.b16 %v366
    %v383 = vunpack.c.l.b16 %v367
    %v384 = vpack.c.b16 %v377, %v376
    %v385 = vpack.c.b16 %v379, %v378
    %v386 = vpack.c.b16 %v381, %v380
    %v387 = vpack.c.b16 %v383, %v382
    %vm388 = vcmask 261120
    %v390 = vsel %vm388, %v384, 0
    %v393 = vsel %vm388, %v385, 0
    %v396 = vsel %vm388, %v386, 0
    %v399 = vsel %vm388, %v387, 0
    %401 = vmatprep.subr.bf16.mxu0 0
    %402 = vmatpush1.bf16.msra.mxu0 %v356
    %403 = vmatprep.subr.bf16.mxu0 0
    %404 = vmatpush1.bf16.msra.mxu0 %v357
    %405 = vmatprep.subr.bf16.mxu0 0
    %406 = vmatpush1.bf16.msra.mxu0 0
    %407 = vmatprep.subr.bf16.mxu0 0
    %408 = vmatpush1.bf16.msra.mxu0 0
    %409 = vmatprep.subr.bf16.mxu0 0
    %410 = vmatpush1.bf16.msra.mxu0 0
    %411 = vmatprep.subr.bf16.mxu0 0
    %412 = vmatpush1.bf16.msra.mxu0 0
    %413 = vmatprep.subr.bf16.mxu0 0
    %414 = vmatpush1.bf16.msra.mxu0 0
    %415 = vmatprep.subr.bf16.mxu0 0
    %416 = vmatpush1.bf16.msra.mxu0 0
    %417 = vmatprep.subr.bf16.mxu0 0
    %418 = vmatpush1.bf16.msra.mxu0 0
    %419 = vmatprep.subr.bf16.mxu0 0
    %420 = vmatpush1.bf16.msra.mxu0 0
    %421 = vmatprep.subr.bf16.mxu0 0
    %422 = vmatpush1.bf16.msra.mxu0 0
    %423 = vmatprep.subr.bf16.mxu0 0
    %424 = vmatpush1.bf16.msra.mxu0 0
    %425 = vmatprep.subr.bf16.mxu0 0
    %426 = vmatpush1.bf16.msra.mxu0 0
    %427 = vmatprep.subr.bf16.mxu0 0
    %428 = vmatpush1.bf16.msra.mxu0 0
    %429 = vmatprep.subr.bf16.mxu0 0
    %430 = vmatpush1.bf16.msra.mxu0 0
    %431 = vmatprep.subr.bf16.mxu0 0
    %432 = vmatpush1.bf16.msra.mxu0 0
    %433 = vmatprep.mubr.bf16.mxu0 0
    %434 = vmatmul.mubr.bf16.gmra.mrb[0].mxu0 %v390
    %v435 = vpop.f32.mrb[0].mxu0
    %v436 = vadd.f32 0.0, %v435
    %v437 = vpop.f32.mrb[0].mxu0
    %v438 = vpop.f32.mrb[0].mxu0
    %v439 = vadd.f32 0.0, %v438
    %v440 = vpop.f32.mrb[0].mxu0
    %441 = vmatprep.mubr.bf16.mxu0 0
    %442 = vmatmul.mubr.bf16.gmra.mrb[0].mxu0 %v393
    %v443 = vpop.f32.mrb[0].mxu0
    %v444 = vadd.f32 0.0, %v443
    %v445 = vpop.f32.mrb[0].mxu0
    %v446 = vpop.f32.mrb[0].mxu0
    %v447 = vadd.f32 0.0, %v446
    %v448 = vpop.f32.mrb[0].mxu0
    %449 = vmatprep.mubr.bf16.mxu0 0
    %450 = vmatmul.mubr.bf16.gmra.mrb[0].mxu0 %v396
    %v451 = vpop.f32.mrb[0].mxu0
    %v452 = vadd.f32 0.0, %v451
    %v453 = vpop.f32.mrb[0].mxu0
    %v454 = vpop.f32.mrb[0].mxu0
    %v455 = vadd.f32 0.0, %v454
    %v456 = vpop.f32.mrb[0].mxu0
    %457 = vmatprep.mubr.bf16.mxu0 0
    %458 = vmatmul.mubr.bf16.gmra.mrb[0].mxu0 %v399
    %v459 = vpop.f32.mrb[0].mxu0
    %v460 = vadd.f32 0.0, %v459
    %v461 = vpop.f32.mrb[0].mxu0
    %v462 = vpop.f32.mrb[0].mxu0
    %v463 = vadd.f32 0.0, %v462
    %v464 = vpop.f32.mrb[0].mxu0
    %465 = vdwg.mxu0
    %466 = vmatprep.subr.bf16.mxu0 0
    %467 = vmatpush1.bf16.msra.mxu0 %v358
    %468 = vmatprep.subr.bf16.mxu0 0
    %469 = vmatpush1.bf16.msra.mxu0 %v359
    %470 = vmatprep.subr.bf16.mxu0 0
    %471 = vmatpush1.bf16.msra.mxu0 0
    %472 = vmatprep.subr.bf16.mxu0 0
    %473 = vmatpush1.bf16.msra.mxu0 0
    %474 = vmatprep.subr.bf16.mxu0 0
    %475 = vmatpush1.bf16.msra.mxu0 0
    %476 = vmatprep.subr.bf16.mxu0 0
    %477 = vmatpush1.bf16.msra.mxu0 0
    %478 = vmatprep.subr.bf16.mxu0 0
    %479 = vmatpush1.bf16.msra.mxu0 0
    %480 = vmatprep.subr.bf16.mxu0 0
    %481 = vmatpush1.bf16.msra.mxu0 0
    %482 = vmatprep.subr.bf16.mxu0 0
    %483 = vmatpush1.bf16.msra.mxu0 0
    %484 = vmatprep.subr.bf16.mxu0 0
    %485 = vmatpush1.bf16.msra.mxu0 0
    %486 = vmatprep.subr.bf16.mxu0 0
    %487 = vmatpush1.bf16.msra.mxu0 0
    %488 = vmatprep.subr.bf16.mxu0 0
    %489 = vmatpush1.bf16.msra.mxu0 0
    %490 = vmatprep.subr.bf16.mxu0 0
    %491 = vmatpush1.bf16.msra.mxu0 0
    %492 = vmatprep.subr.bf16.mxu0 0
    %493 = vmatpush1.bf16.msra.mxu0 0
    %494 = vmatprep.subr.bf16.mxu0 0
    %495 = vmatpush1.bf16.msra.mxu0 0
    %496 = vmatprep.subr.bf16.mxu0 0
    %497 = vmatpush1.bf16.msra.mxu0 0
    %498 = vmatprep.mubr.bf16.mxu0 0
    %499 = vmatmul.mubr.bf16.gmra.mrb[0].mxu0 %v390
    %v500 = vpop.f32.mrb[0].mxu0
    %v501 = vadd.f32 0.0, %v500
    %v502 = vpop.f32.mrb[0].mxu0
    %v503 = vpop.f32.mrb[0].mxu0
    %v504 = vadd.f32 0.0, %v503
    %v505 = vpop.f32.mrb[0].mxu0
    %506 = vmatprep.mubr.bf16.mxu0 0
    %507 = vmatmul.mubr.bf16.gmra.mrb[0].mxu0 %v393
    %v508 = vpop.f32.mrb[0].mxu0
    %v509 = vadd.f32 0.0, %v508
    %v510 = vpop.f32.mrb[0].mxu0
    %v511 = vpop.f32.mrb[0].mxu0
    %v512 = vadd.f32 0.0, %v511
    %v513 = vpop.f32.mrb[0].mxu0
    %514 = vmatprep.mubr.bf16.mxu0 0
    %515 = vmatmul.mubr.bf16.gmra.mrb[0].mxu0 %v396
    %v516 = vpop.f32.mrb[0].mxu0
    %v517 = vadd.f32 0.0, %v516
    %v518 = vpop.f32.mrb[0].mxu0
    %v519 = vpop.f32.mrb[0].mxu0
    %v520 = vadd.f32 0.0, %v519
    %v521 = vpop.f32.mrb[0].mxu0
    %522 = vmatprep.mubr.bf16.mxu0 0
    %523 = vmatmul.mubr.bf16.gmra.mrb[0].mxu0 %v399
    %v524 = vpop.f32.mrb[0].mxu0
    %v525 = vadd.f32 0.0, %v524
    %v526 = vpop.f32.mrb[0].mxu0
    %v527 = vpop.f32.mrb[0].mxu0
    %v528 = vadd.f32 0.0, %v527
    %v529 = vpop.f32.mrb[0].mxu0
    %530 = vdwg.mxu0
    %v531 = vld [vmem:[#allocation2] sm:$0x3]
    %532 = vmax.xlane.f32.xlu0 %v436
    %v533 = vpop.xlane.xlu0 %532
    %534 = vmax.xlane.f32.xlu0 %v439
    %v535 = vpop.xlane.xlu0 %534
    %536 = vmax.xlane.f32.xlu0 %v444
    %v537 = vpop.xlane.xlu0 %536
    %538 = vmax.xlane.f32.xlu0 %v447
    %v539 = vpop.xlane.xlu0 %538
    %540 = vmax.xlane.f32.xlu0 %v452
    %v541 = vpop.xlane.xlu0 %540
    %542 = vmax.xlane.f32.xlu0 %v455
    %v543 = vpop.xlane.xlu0 %542
    %544 = vmax.xlane.f32.xlu0 %v460
    %v545 = vpop.xlane.xlu0 %544
    %546 = vmax.xlane.f32.xlu0 %v463
    %v547 = vpop.xlane.xlu0 %546
    %548 = vmax.xlane.f32.xlu0 %v501
    %v549 = vpop.xlane.xlu0 %548
    %550 = vmax.xlane.f32.xlu0 %v504
    %v551 = vpop.xlane.xlu0 %550
    %552 = vmax.xlane.f32.xlu0 %v509
    %v553 = vpop.xlane.xlu0 %552
    %554 = vmax.xlane.f32.xlu0 %v512
    %v555 = vpop.xlane.xlu0 %554
    %556 = vmax.xlane.f32.xlu0 %v517
    %v557 = vpop.xlane.xlu0 %556
    %558 = vmax.xlane.f32.xlu0 %v520
    %v559 = vpop.xlane.xlu0 %558
    %560 = vmax.xlane.f32.xlu0 %v525
    %v561 = vpop.xlane.xlu0 %560
    %562 = vmax.xlane.f32.xlu0 %v528
    %v563 = vpop.xlane.xlu0 %562
    %v580 = vlaneseq
    %v581 = vand.u32 %v580, 127
    %v582 = vlaneseq
    %v583 = vshrl.u32 %v582, 7
    %v584 = vsub.s32 %v581, %v583
    %v585 = vrot.slane %v533, %v584
    %v586 = vadd.s32 %v581, 4294967288
    %v587 = vlaneseq
    %v588 = vshrl.u32 %v587, 7
    %v589 = vsub.s32 %v586, %v588
    %v590 = vrot.slane %v535, %v589
    %vm591 = vcmask 130112
    %v592 = vsel %vm591, %v590, %v585
    %v593 = vadd.s32 %v581, 4294967280
    %v594 = vlaneseq
    %v595 = vshrl.u32 %v594, 7
    %v596 = vsub.s32 %v593, %v595
    %v597 = vrot.slane %v537, %v596
    %vm598 = vcmask 195712
    %v599 = vsel %vm598, %v597, %v592
    %v600 = vadd.s32 %v581, 4294967272
    %v601 = vlaneseq
    %v602 = vshrl.u32 %v601, 7
    %v603 = vsub.s32 %v600, %v602
    %v604 = vrot.slane %v539, %v603
    %vm605 = vcmask 261312
    %v606 = vsel %vm605, %v604, %v599
    %v607 = vadd.s32 %v581, 4294967264
    %v608 = vlaneseq
    %v609 = vshrl.u32 %v608, 7
    %v610 = vsub.s32 %v607, %v609
    %v611 = vrot.slane %v541, %v610
    %vm612 = vcmask 326912
    %v613 = vsel %vm612, %v611, %v606
    %v614 = vadd.s32 %v581, 4294967256
    %v615 = vlaneseq
    %v616 = vshrl.u32 %v615, 7
    %v617 = vsub.s32 %v614, %v616
    %v618 = vrot.slane %v543, %v617
    %vm619 = vcmask 392512
    %v620 = vsel %vm619, %v618, %v613
    %v621 = vadd.s32 %v581, 4294967248
    %v622 = vlaneseq
    %v623 = vshrl.u32 %v622, 7
    %v624 = vsub.s32 %v621, %v623
    %v625 = vrot.slane %v545, %v624
    %vm626 = vcmask 458112
    %v627 = vsel %vm626, %v625, %v620
    %v628 = vadd.s32 %v581, 4294967240
    %v629 = vlaneseq
    %v630 = vshrl.u32 %v629, 7
    %v631 = vsub.s32 %v628, %v630
    %v632 = vrot.slane %v547, %v631
    %vm633 = vcmask 523712
    %v634 = vsel %vm633, %v632, %v627
    %v635 = vlaneseq
    %v636 = vshrl.u32 %v635, 7
    %v637 = vsub.s32 %v581, %v636
    %v638 = vrot.slane %v549, %v637
    %v639 = vlaneseq
    %v640 = vshrl.u32 %v639, 7
    %v641 = vsub.s32 %v586, %v640
    %v642 = vrot.slane %v551, %v641
    %v643 = vsel %vm591, %v642, %v638
    %v644 = vlaneseq
    %v645 = vshrl.u32 %v644, 7
    %v646 = vsub.s32 %v593, %v645
    %v647 = vrot.slane %v553, %v646
    %v648 = vsel %vm598, %v647, %v643
    %v649 = vlaneseq
    %v650 = vshrl.u32 %v649, 7
    %v651 = vsub.s32 %v600, %v650
    %v652 = vrot.slane %v555, %v651
    %v653 = vsel %vm605, %v652, %v648
    %v654 = vlaneseq
    %v655 = vshrl.u32 %v654, 7
    %v656 = vsub.s32 %v607, %v655
    %v657 = vrot.slane %v557, %v656
    %v658 = vsel %vm612, %v657, %v653
    %v659 = vlaneseq
    %v660 = vshrl.u32 %v659, 7
    %v661 = vsub.s32 %v614, %v660
    %v662 = vrot.slane %v559, %v661
    %v663 = vsel %vm619, %v662, %v658
    %v664 = vlaneseq
    %v665 = vshrl.u32 %v664, 7
    %v666 = vsub.s32 %v621, %v665
    %v667 = vrot.slane %v561, %v666
    %v668 = vsel %vm626, %v667, %v663
    %v669 = vlaneseq
    %v670 = vshrl.u32 %v669, 7
    %v671 = vsub.s32 %v628, %v670
    %v672 = vrot.slane %v563, %v671
    %v673 = vsel %vm633, %v672, %v668
    %vm674 = vcmask 1041409
    %v675 = vsel %vm674, %v673, %v634
    %v677 = vmax.f32 %v531, %v675
    %vm678 = vcmask 517120
    %679 = vst.msk [vmem:[#allocation2] sm:$0x3] %vm678, %v677
    // Predicated region
    $region78: #{tpu_custom_call.1} parent=1 // pred_check
      %p680 = pneg %p150
    $region79: #{tpu_custom_call.1} parent=1 // pred_check_branch
      %682 = sbr.rel (%p680) target = $region81
    $region80: #{tpu_custom_call.1} parent=1 // pred_region
      %v683 = vld [vmem:[#allocation2] sm:$0x3]
      %v684 = vld [vmem:[#allocation11] sm:$0x1]
      %v686 = vlaneseq
      %v687 = vshrl.u32 %v686, 7
      %v688 = vsub.s32 0, %v687
      %v689 = vrot.slane %v684, %v688
      %v691 = vadd.f32 %v683, %v689
      %v692 = vpack.c.bf16 %v691, %v691
      %v693 = vld [vmem:[#allocation12] sm:$0xf]
      %v694 = vld [vmem:[#allocation12 + $0x4] sm:$0xf]
      %v695 = vld [vmem:[#allocation12 + $0x8] sm:$0xf]
      %v696 = vld [vmem:[#allocation12 + $0xc] sm:$0xf]
      %v697 = vld [vmem:[#allocation12 + $0x10] sm:$0xf]
      %v698 = vld [vmem:[#allocation12 + $0x14] sm:$0xf]
      %v699 = vld [vmem:[#allocation12 + $0x18] sm:$0xf]
      %v700 = vld [vmem:[#allocation12 + $0x1c] sm:$0xf]
      %v701 = vld [vmem:[#allocation14] sm:$0x1]
      %v710 = vunpack.c.l.b16 %v693
      %v711 = vunpack.c.l.b16 %v694
      %v712 = vunpack.c.l.b16 %v695
      %v713 = vunpack.c.l.b16 %v696
      %v714 = vunpack.c.l.b16 %v697
      %v715 = vunpack.c.l.b16 %v698
      %v716 = vunpack.c.l.b16 %v699
      %v717 = vunpack.c.l.b16 %v700
      %v718 = vpack.c.b16 %v711, %v710
      %v719 = vpack.c.b16 %v713, %v712
      %v720 = vpack.c.b16 %v715, %v714
      %v721 = vpack.c.b16 %v717, %v716
      %vm726 = vcmask 523264
      %v728 = vsel %vm726, %v692, 0
      %730 = vmatprep.subr.bf16.mxu0 0
      %731 = vmatpush1.bf16.msra.mxu0 %v718
      %732 = vmatprep.subr.bf16.mxu0 0
      %733 = vmatpush1.bf16.msra.mxu0 %v719
      %734 = vmatprep.subr.bf16.mxu0 0
      %735 = vmatpush1.bf16.msra.mxu0 %v720
      %736 = vmatprep.subr.bf16.mxu0 0
      %737 = vmatpush1.bf16.msra.mxu0 %v721
      %738 = vmatprep.subr.bf16.mxu0 0
      %739 = vmatpush1.bf16.msra.mxu0 0
      %740 = vmatprep.subr.bf16.mxu0 0
      %741 = vmatpush1.bf16.msra.mxu0 0
      %742 = vmatprep.subr.bf16.mxu0 0
      %743 = vmatpush1.bf16.msra.mxu0 0
      %744 = vmatprep.subr.bf16.mxu0 0
      %745 = vmatpush1.bf16.msra.mxu0 0
      %746 = vmatprep.subr.bf16.mxu0 0
      %747 = vmatpush1.bf16.msra.mxu0 0
      %748 = vmatprep.subr.bf16.mxu0 0
      %749 = vmatpush1.bf16.msra.mxu0 0
      %750 = vmatprep.subr.bf16.mxu0 0
      %751 = vmatpush1.bf16.msra.mxu0 0
      %752 = vmatprep.subr.bf16.mxu0 0
      %753 = vmatpush1.bf16.msra.mxu0 0
      %754 = vmatprep.subr.bf16.mxu0 0
      %755 = vmatpush1.bf16.msra.mxu0 0
      %756 = vmatprep.subr.bf16.mxu0 0
      %757 = vmatpush1.bf16.msra.mxu0 0
      %758 = vmatprep.subr.bf16.mxu0 0
      %759 = vmatpush1.bf16.msra.mxu0 0
      %760 = vmatprep.subr.bf16.mxu0 0
      %761 = vmatpush1.bf16.msra.mxu0 0
      %762 = vmatprep.mubr.bf16.mxu0 0
      %763 = vmatmul.mubr.bf16.gmra.mrb[0].mxu0 %v728
      %v764 = vpop.f32.mrb[0].mxu0
      %v765 = vadd.f32 0.0, %v764
      %v766 = vpop.f32.mrb[0].mxu0
      %v767 = vpop.f32.mrb[0].mxu0
      %v768 = vpop.f32.mrb[0].mxu0
      %769 = vdwg.mxu0
      %v770 = vpack.c.bf16 %v765, %v765
      %v772 = vpack.i.b16 %v701, %v701
      %v774 = vlaneseq
      %v775 = vshrl.u32 %v774, 7
      %v776 = vsub.s32 0, %v775
      %v777 = vrot.slane %v772, %v776
      %v778 = vadd.bf16 %v770, %v777
      %v779 = vmax.bf16 %v778, 0
      %v780 = vld [vmem:[#allocation15] sm:$0xf]
      %v781 = vld [vmem:[#allocation15 + $0x4] sm:$0xf]
      %v782 = vld [vmem:[#allocation15 + $0x8] sm:$0xf]
      %v783 = vld [vmem:[#allocation15 + $0xc] sm:$0xf]
      %v784 = vld [vmem:[#allocation17] sm:$0x1]
      %v789 = vunpack.c.l.b16 %v780
      %v790 = vunpack.c.l.b16 %v781
      %v791 = vunpack.c.l.b16 %v782
      %v792 = vunpack.c.l.b16 %v783
      %v793 = vpack.c.b16 %v790, %v789
      %v794 = vpack.c.b16 %v792, %v791
      %v798 = vsel %vm388, %v779, 0
      %800 = vmatprep.subr.bf16.mxu0 0
      %801 = vmatpush1.bf16.msra.mxu0 %v793
      %802 = vmatprep.subr.bf16.mxu0 0
      %803 = vmatpush1.bf16.msra.mxu0 %v794
      %804 = vmatprep.subr.bf16.mxu0 0
      %805 = vmatpush1.bf16.msra.mxu0 0
      %806 = vmatprep.subr.bf16.mxu0 0
      %807 = vmatpush1.bf16.msra.mxu0 0
      %808 = vmatprep.subr.bf16.mxu0 0
      %809 = vmatpush1.bf16.msra.mxu0 0
      %810 = vmatprep.subr.bf16.mxu0 0
      %811 = vmatpush1.bf16.msra.mxu0 0
      %812 = vmatprep.subr.bf16.mxu0 0
      %813 = vmatpush1.bf16.msra.mxu0 0
      %814 = vmatprep.subr.bf16.mxu0 0
      %815 = vmatpush1.bf16.msra.mxu0 0
      %816 = vmatprep.subr.bf16.mxu0 0
      %817 = vmatpush1.bf16.msra.mxu0 0
      %818 = vmatprep.subr.bf16.mxu0 0
      %819 = vmatpush1.bf16.msra.mxu0 0
      %820 = vmatprep.subr.bf16.mxu0 0
      %821 = vmatpush1.bf16.msra.mxu0 0
      %822 = vmatprep.subr.bf16.mxu0 0
      %823 = vmatpush1.bf16.msra.mxu0 0
      %824 = vmatprep.subr.bf16.mxu0 0
      %825 = vmatpush1.bf16.msra.mxu0 0
      %826 = vmatprep.subr.bf16.mxu0 0
      %827 = vmatpush1.bf16.msra.mxu0 0
      %828 = vmatprep.subr.bf16.mxu0 0
      %829 = vmatpush1.bf16.msra.mxu0 0
      %830 = vmatprep.subr.bf16.mxu0 0
      %831 = vmatpush1.bf16.msra.mxu0 0
      %832 = vmatprep.mubr.bf16.mxu0 0
      %833 = vmatmul.mubr.bf16.gmra.mrb[0].mxu0 %v798
      %v834 = vpop.f32.mrb[0].mxu0
      %v835 = vadd.f32 0.0, %v834
      %v836 = vpop.f32.mrb[0].mxu0
      %v837 = vpop.f32.mrb[0].mxu0
      %v838 = vpop.f32.mrb[0].mxu0
      %839 = vdwg.mxu0
      %v840 = vpack.c.bf16 %v835, %v835
      %v842 = vpack.i.b16 %v784, %v784
      %v844 = vlaneseq
      %v845 = vshrl.u32 %v844, 7
      %v846 = vsub.s32 0, %v845
      %v847 = vrot.slane %v842, %v846
      %v848 = vadd.bf16 %v840, %v847
      %v849 = vunpack.c.l.bf16 %v848
      %850 = vst [vmem:[#allocation18] sm:$0x3] %v849
    $region81: #{tpu_custom_call.1} parent=1 // pred_fallthru
      _
    // Predicated region
    $region82: #{tpu_custom_call.1} parent=1 // pred_check
      _
    $region83: #{tpu_custom_call.1} parent=1 // pred_check_branch
      %852 = sbr.rel (0) target = $region85
    $region84: #{tpu_custom_call.1} parent=1 // pred_region
      %s854 = ssub.s32 32, 32
      %855 = vsyncadd [#allocation5], %s854
      %s857 = sshll.u32 [#allocation18], 4
      %s858 = int_to_ptr.vmem [resolvable:$true] %s857
      %860 = dma.vmem_to_hbm [thread:$0]  %s858, 32, %s9, [#allocation5]
    $region85: #{tpu_custom_call.1} parent=1 // pred_fallthru
      _
    // Predicated region
    $region86: #{tpu_custom_call.1} parent=1 // pred_check
      _
    $region87: #{tpu_custom_call.1} parent=1 // pred_check_branch
      %862 = sbr.rel (0) target = $region89
    $region88: #{tpu_custom_call.1} parent=1 // pred_region
      %863 = dma.done [#allocation5], 32
    $region89: #{tpu_custom_call.1} parent=1 // pred_fallthru
      _
    %864 = vsyncpa [#allocation4], 1
    %865 = vsyncpa [#allocation7], 1
    %866 = vsyncpa [#allocation10], 1
    %867 = vsyncpa [#allocation13], 1
    %868 = vsyncpa [#allocation16], 1
    %869 = vsyncpa [#allocation5], 1

</llo_original>
